<compile_context>
chip_gen: v6e
topology: v6e:2x2x1
jax: 0.10.0
libtpu: 0.0.40
codegen_flags: <defaults>
</compile_context>

<pallas_src>
import functools

import jax
import jax.numpy as jnp
from jax.experimental import pallas as pl
from jax.experimental.pallas import tpu as pltpu


def _text_classifier_kernel(x_ref, w1_ref, b1_ref, w2_ref, b2_ref, w3_ref, b3_ref,
                            o_ref):
    # Layer 1: Linear(in_features -> 128) + ReLU   (MXU, bf16 in / f32 acc)
    z1 = jnp.dot(x_ref[...], w1_ref[...], preferred_element_type=jnp.float32)
    z1 = jnp.maximum(z1 + b1_ref[...], 0.0)                       # (TB, 128) f32

    # Layer 2: Linear(128 -> 64) + ReLU
    z2 = jnp.dot(z1.astype(jnp.bfloat16), w2_ref[...],
                 preferred_element_type=jnp.float32)
    z2 = jnp.maximum(z2 + b2_ref[...], 0.0)                       # (TB, 64) f32

    # Layer 3: Linear(64 -> 1) + Sigmoid, kept off the MXU:
    # VPU multiply + XLU lane reduction; result is laid out lane-dense as a
    # (1, TB) row so the output store is a full-lane unmasked vst.
    z3 = jnp.sum(z2 * w3_ref[...], axis=-1).reshape(1, -1) + b3_ref[...]  # (1, TB)
    # sigmoid via EUP exp + EUP approximate reciprocal (both off the VALU path).
    o_ref[...] = pl.reciprocal(1.0 + jnp.exp(-z3), approx=True).astype(o_ref.dtype)


def _nbytes(shape, dtype):
    n = 1
    for d in shape:
        n *= int(d)
    return n * jnp.dtype(dtype).itemsize


@functools.partial(jax.jit, static_argnames=("tb",))
def text_classifier_forward(x, w1, b1, w2, b2, w3, b3, *, tb=128):
    """x: (B, in_features) f32; w*: (in, out); b*: (1, out). Returns (B, 1) f32."""
    B, in_features = x.shape

    # Cast matmul operands to bf16 (halves HBM traffic for x/W1, doubles MXU rate).
    xb = x.astype(jnp.bfloat16)
    w1b = w1.astype(jnp.bfloat16)
    w2b = w2.astype(jnp.bfloat16)
    w3r = w3.reshape(1, w3.shape[0]).astype(jnp.float32)  # row layout for VPU reduce

    # Pad batch to a multiple of the tile (keeps bf16 sublane packing happy).
    bp = pl.cdiv(B, tb) * tb
    if bp != B:
        xb = jnp.pad(xb, ((0, bp - B), (0, 0)))
    grid = (bp // tb,)

    # VMEM budget: double-buffered tiles + headroom for f32 intermediates.
    tile_bytes = (
        _nbytes((tb, in_features), jnp.bfloat16)      # x tile
        + _nbytes((in_features, 128), jnp.bfloat16)   # W1
        + _nbytes((128, 64), jnp.bfloat16)            # W2
        + _nbytes((1, 64), jnp.float32)               # w3 row
        + _nbytes((1, 128), jnp.float32)              # b1
        + _nbytes((1, 64), jnp.float32)               # b2
        + _nbytes((1, 1), jnp.float32)                # b3
        + _nbytes((tb, 128), jnp.float32)             # f32 intermediates
        + _nbytes((1, tb), jnp.float32)               # out row
    )
    vmem_limit = int(min(max(8 * tile_bytes, 4 * 1024 * 1024), 48 * 1024 * 1024))

    batch_spec = pl.BlockSpec((tb, in_features), lambda i: (i, 0))
    resident = lambda a: pl.BlockSpec(a.shape, lambda i: (0,) * a.ndim)

    out = pl.pallas_call(
        _text_classifier_kernel,
        out_shape=jax.ShapeDtypeStruct((1, bp), jnp.float32),   # lane-dense slab
        grid=grid,
        in_specs=[batch_spec, resident(w1b), resident(b1), resident(w2b),
                  resident(b2), resident(w3r), resident(b3)],
        out_specs=pl.BlockSpec((1, tb), lambda i: (0, i)),
        compiler_params=pltpu.CompilerParams(
            dimension_semantics=("parallel",),
            vmem_limit_bytes=vmem_limit,
        ),
    )(xb, w1b, b1, w2b, b2, w3r, b3)

    return out.reshape(-1, 1)[:B]


def init_params(key, in_features):
    """Matches TextClassifier.init_weights(): weights ~ U(-0.5, 0.5), biases zero.
    Weights stored as (in_dim, out_dim) (transposed vs PyTorch's (out, in))."""
    initrange = 0.5
    k1, k2, k3 = jax.random.split(key, 3)
    w1 = jax.random.uniform(k1, (in_features, 128), jnp.float32, -initrange, initrange)
    b1 = jnp.zeros((1, 128), jnp.float32)
    w2 = jax.random.uniform(k2, (128, 64), jnp.float32, -initrange, initrange)
    b2 = jnp.zeros((1, 64), jnp.float32)
    w3 = jax.random.uniform(k3, (64, 1), jnp.float32, -initrange, initrange)
    b3 = jnp.zeros((1, 1), jnp.float32)
    return w1, b1, w2, b2, w3, b3


def reference_forward(x, w1, b1, w2, b2, w3, b3, *, bf16_operands=True):
    """Plain-JAX reference. bf16_operands=True mirrors the kernel's mixed-precision
    choice (bf16 matmul inputs, f32 accumulation / elementwise)."""
    if bf16_operands:
        x, w1, w2 = (a.astype(jnp.bfloat16) for a in (x, w1, w2))
    z1 = jnp.maximum(jnp.dot(x, w1, preferred_element_type=jnp.float32) + b1, 0.0)
    if bf16_operands:
        z1 = z1.astype(jnp.bfloat16)
    z2 = jnp.maximum(jnp.dot(z1, w2, preferred_element_type=jnp.float32) + b2, 0.0)
    z3 = jnp.dot(z2, w3.astype(jnp.float32), preferred_element_type=jnp.float32) + b3
    return jax.nn.sigmoid(z3)


if __name__ == "__main__":
    key = jax.random.PRNGKey(0)
    kx, kp = jax.random.split(key)

    batch, in_features = 256, 256
    x = jax.random.normal(kx, (batch, in_features), jnp.float32)
    params = init_params(kp, in_features)

    out = jax.block_until_ready(text_classifier_forward(x, *params))

    ref = reference_forward(x, *params)      # same mixed-precision recipe
    assert out.shape == (batch, 1)
    max_err = float(jnp.max(jnp.abs(out - ref)))
    assert jnp.allclose(out, ref, atol=5e-3, rtol=5e-3), max_err

    print("KERNEL_OK")
</pallas_src>

<mosaic_0001>
module attributes {stable_mosaic.version = 11 : i64} {
  func.func @_text_classifier_kernel(%arg0: i32, %arg1: memref<128x256xbf16, #tpu.memory_space<vmem>>, %arg2: memref<256x128xbf16, #tpu.memory_space<vmem>>, %arg3: memref<1x128xf32, #tpu.memory_space<vmem>>, %arg4: memref<128x64xbf16, #tpu.memory_space<vmem>>, %arg5: memref<1x64xf32, #tpu.memory_space<vmem>>, %arg6: memref<1x64xf32, #tpu.memory_space<vmem>>, %arg7: memref<1x1xf32, #tpu.memory_space<vmem>>, %arg8: memref<1x128xf32, #tpu.memory_space<vmem>>) attributes {dimension_semantics = [#tpu.dimension_semantics<parallel>], iteration_bounds = array<i64: 2>, scalar_prefetch = 0 : i64, scratch_operands = 0 : i64, tpu.core_type = #tpu.core_type<tc>, window_params = [{transform_indices = @transform_0, window_bounds = array<i64: 128, 256>}, {pipeline_mode = #tpu.pipeline_mode<synchronous>, transform_indices = @transform_1, window_bounds = array<i64: 256, 128>}, {pipeline_mode = #tpu.pipeline_mode<synchronous>, transform_indices = @transform_2, window_bounds = array<i64: 1, 128>}, {pipeline_mode = #tpu.pipeline_mode<synchronous>, transform_indices = @transform_3, window_bounds = array<i64: 128, 64>}, {pipeline_mode = #tpu.pipeline_mode<synchronous>, transform_indices = @transform_4, window_bounds = array<i64: 1, 64>}, {pipeline_mode = #tpu.pipeline_mode<synchronous>, transform_indices = @transform_5, window_bounds = array<i64: 1, 64>}, {pipeline_mode = #tpu.pipeline_mode<synchronous>, transform_indices = @transform_6, window_bounds = array<i64: 1, 1>}, {transform_indices = @transform_7, window_bounds = array<i64: 1, 128>}]} {
    %c0 = arith.constant 0 : index
    %c0_0 = arith.constant 0 : index
    %0 = vector.load %arg1[%c0, %c0_0] : memref<128x256xbf16, #tpu.memory_space<vmem>>, vector<128x256xbf16>
    %c0_1 = arith.constant 0 : index
    %c0_2 = arith.constant 0 : index
    %1 = vector.load %arg2[%c0_1, %c0_2] : memref<256x128xbf16, #tpu.memory_space<vmem>>, vector<256x128xbf16>
    %cst = arith.constant dense<0.000000e+00> : vector<128x128xf32>
    %2 = tpu.matmul %0, %1, %cst {dimension_numbers = #tpu.dot_dimension_numbers<[1], [0], [0], [1], [0, 0, 1, 1], [], []>} : vector<128x256xbf16>, vector<256x128xbf16>, vector<128x128xf32> -> vector<128x128xf32>
    %c0_3 = arith.constant 0 : index
    %c0_4 = arith.constant 0 : index
    %3 = vector.load %arg3[%c0_3, %c0_4] : memref<1x128xf32, #tpu.memory_space<vmem>>, vector<1x128xf32>
    %4 = vector.broadcast %3 : vector<1x128xf32> to vector<128x128xf32>
    %5 = arith.addf %2, %4 : vector<128x128xf32>
    %cst_5 = arith.constant 0.000000e+00 : f32
    %6 = vector.broadcast %cst_5 : f32 to vector<128x128xf32>
    %7 = arith.maximumf %5, %6 : vector<128x128xf32>
    %8 = arith.truncf %7 : vector<128x128xf32> to vector<128x128xbf16>
    %c0_6 = arith.constant 0 : index
    %c0_7 = arith.constant 0 : index
    %9 = vector.load %arg4[%c0_6, %c0_7] : memref<128x64xbf16, #tpu.memory_space<vmem>>, vector<128x64xbf16>
    %cst_8 = arith.constant dense<0.000000e+00> : vector<128x64xf32>
    %10 = tpu.matmul %8, %9, %cst_8 {dimension_numbers = #tpu.dot_dimension_numbers<[1], [0], [0], [1], [0, 0, 1, 1], [], []>} : vector<128x128xbf16>, vector<128x64xbf16>, vector<128x64xf32> -> vector<128x64xf32>
    %c0_9 = arith.constant 0 : index
    %c0_10 = arith.constant 0 : index
    %11 = vector.load %arg5[%c0_9, %c0_10] : memref<1x64xf32, #tpu.memory_space<vmem>>, vector<1x64xf32>
    %12 = vector.broadcast %11 : vector<1x64xf32> to vector<128x64xf32>
    %13 = arith.addf %10, %12 : vector<128x64xf32>
    %cst_11 = arith.constant 0.000000e+00 : f32
    %14 = vector.broadcast %cst_11 : f32 to vector<128x64xf32>
    %15 = arith.maximumf %13, %14 : vector<128x64xf32>
    %c0_12 = arith.constant 0 : index
    %c0_13 = arith.constant 0 : index
    %16 = vector.load %arg6[%c0_12, %c0_13] : memref<1x64xf32, #tpu.memory_space<vmem>>, vector<1x64xf32>
    %17 = vector.broadcast %16 : vector<1x64xf32> to vector<128x64xf32>
    %18 = arith.mulf %15, %17 : vector<128x64xf32>
    %cst_14 = arith.constant dense<0.000000e+00> : vector<128xf32>
    %19 = vector.multi_reduction <add>, %18, %cst_14 [1] : vector<128x64xf32> to vector<128xf32>
    %20 = vector.shape_cast %19 : vector<128xf32> to vector<1x128xf32>
    %c0_15 = arith.constant 0 : index
    %c0_16 = arith.constant 0 : index
    %21 = vector.load %arg7[%c0_15, %c0_16] : memref<1x1xf32, #tpu.memory_space<vmem>>, vector<1x1xf32>
    %22 = vector.broadcast %21 : vector<1x1xf32> to vector<1x128xf32>
    %23 = arith.addf %20, %22 : vector<1x128xf32>
    %cst_17 = arith.constant 0.000000e+00 : f32
    %24 = vector.broadcast %cst_17 : f32 to vector<1x128xf32>
    %25 = arith.subf %24, %23 : vector<1x128xf32>
    %26 = math.exp %25 : vector<1x128xf32>
    %cst_18 = arith.constant 1.000000e+00 : f32
    %27 = vector.broadcast %cst_18 : f32 to vector<1x128xf32>
    %28 = arith.addf %27, %26 : vector<1x128xf32>
    %29 = tpu.reciprocal %28 {approx = true} : vector<1x128xf32> -> vector<1x128xf32>
    %c0_19 = arith.constant 0 : index
    %c0_20 = arith.constant 0 : index
    %30 = vector.load %arg8[%c0_19, %c0_20] : memref<1x128xf32, #tpu.memory_space<vmem>>, vector<1x128xf32>
    tpu.vector_store %arg8[%c0_19, %c0_20], %29 {strides = array<i32>} : memref<1x128xf32, #tpu.memory_space<vmem>>, vector<1x128xf32>,
    return
  }
  func.func @transform_0(%arg0: i32) -> (i32, i32) {
    %c0_i32 = arith.constant 0 : i32
    %c0_i32_0 = arith.constant 0 : i32
    return %arg0, %c0_i32 : i32, i32
  }
  func.func @transform_1(%arg0: i32) -> (i32, i32) {
    %c0_i32 = arith.constant 0 : i32
    %c0_i32_0 = arith.constant 0 : i32
    %c0_i32_1 = arith.constant 0 : i32
    return %c0_i32, %c0_i32_0 : i32, i32
  }
  func.func @transform_2(%arg0: i32) -> (i32, i32) {
    %c0_i32 = arith.constant 0 : i32
    %c0_i32_0 = arith.constant 0 : i32
    %c0_i32_1 = arith.constant 0 : i32
    return %c0_i32, %c0_i32_0 : i32, i32
  }
  func.func @transform_3(%arg0: i32) -> (i32, i32) {
    %c0_i32 = arith.constant 0 : i32
    %c0_i32_0 = arith.constant 0 : i32
    %c0_i32_1 = arith.constant 0 : i32
    return %c0_i32, %c0_i32_0 : i32, i32
  }
  func.func @transform_4(%arg0: i32) -> (i32, i32) {
    %c0_i32 = arith.constant 0 : i32
    %c0_i32_0 = arith.constant 0 : i32
    %c0_i32_1 = arith.constant 0 : i32
    return %c0_i32, %c0_i32_0 : i32, i32
  }
  func.func @transform_5(%arg0: i32) -> (i32, i32) {
    %c0_i32 = arith.constant 0 : i32
    %c0_i32_0 = arith.constant 0 : i32
    %c0_i32_1 = arith.constant 0 : i32
    return %c0_i32, %c0_i32_0 : i32, i32
  }
  func.func @transform_6(%arg0: i32) -> (i32, i32) {
    %c0_i32 = arith.constant 0 : i32
    %c0_i32_0 = arith.constant 0 : i32
    %c0_i32_1 = arith.constant 0 : i32
    return %c0_i32, %c0_i32_0 : i32, i32
  }
  func.func @transform_7(%arg0: i32) -> (i32, i32) {
    %c0_i32 = arith.constant 0 : i32
    %c0_i32_0 = arith.constant 0 : i32
    return %c0_i32, %arg0 : i32, i32
  }
}

</mosaic_0001>

<llo_original>
// kernel: text_classifier_forward.1
$region0: #{text_classifier_forward.1}
  #allocation0 [shape = 'u32[]', space=smem, size = 0x4, offset = 0x4, fixed_abs, tag = 'smem constant byte address 0x4 - core index']
  #allocation1 [shape = 'u32[144,128]{1,0:T(1,128)}', space=vmem, size = 0x12000, scoped, tag = 'internal scratch']
  #allocation2 [shape = 'f32[1,1]{1,0:T(1,128)S(1)}', space=vmem, size = 0x200, scoped, tag = 'scoped memory for text_classifier_forward.1']
  %s0 = inlined_call_operand.vmem [shape: bf16[256,256], index: 0, kind: input, shape index: {}]
  %s1 = inlined_call_operand.vmem [shape: bf16[256,128], index: 1, kind: input, shape index: {}]
  %s2 = inlined_call_operand.vmem [shape: f32[1,128], index: 2, kind: input, shape index: {}]
  %s3 = inlined_call_operand.vmem [shape: bf16[128,64], index: 3, kind: input, shape index: {}]
  %s4 = inlined_call_operand.vmem [shape: f32[1,64], index: 4, kind: input, shape index: {}]
  %s5 = inlined_call_operand.vmem [shape: f32[1,64], index: 5, kind: input, shape index: {}]
  %s6 = inlined_call_operand.<no memory space> [shape: f32[1,1], index: 6, kind: input, shape index: {}]
  %s7 = inlined_call_operand.hbm [shape: f32[1,256], index: 7, kind: output, shape index: {}]
  %s8 = sld [smem:[#allocation0]]
  $region61: #{text_classifier_forward.1} parent=0
    _
  %s10 = ssub.s32 1, %s8
  %s11 = scalar_select 0, %s10, %s8
  %v12 = vstv %s6
  %13 = vst [vmem:[#allocation2] sm:$0x1] %v12
  $region1: #{text_classifier_forward.1} parent=0
    #allocation3 [shape = 'u8[1024]{0}', space=vmem, size = 0x400, scoped, tag = 'output window, operand 0']
    #allocation4 [shape = 's32[2]{0}', space=sflag, size = 0x8, scoped, tag = 'scoped memory for text_classifier_forward.1']
    %14 = vsyncpa [#allocation4], 0
    %s15 = scalar_lea.sflag [#allocation4], 1
    %16 = vsyncpa %s15, 0
    loop: start=0, step=1, limit=4
    $region2: #{text_classifier_forward.1} parent=1 // loop_pre_header
      _
    $region3: #{text_classifier_forward.1} parent=1 // loop_header
      %s18 = sphi 0, %s22
      %p19 = scmp.ge.s32.totalorder %s18, 4
      %s28 = sphi 0, %s30
      %s31 = sphi 0, %s28
      %s32 = sphi 0, %s31
      %s48 = sphi 0, %s32
      %s52 = sphi 0, %s52
      %s54 = sphi 0, %s52
      %s55 = sphi 0, %s54
      %s69 = sphi 0, %s55
      %s73 = sphi 0, %s73
      %s75 = sphi 0, %s73
      %s76 = sphi 0, %s75
      %s90 = sphi 0, %s76
      %s94 = sphi 0, %s94
      %s96 = sphi 0, %s94
      %s97 = sphi 0, %s96
      %s111 = sphi 0, %s97
      %s115 = sphi 0, %s115
      %s117 = sphi 0, %s115
      %s118 = sphi 0, %s117
      %s132 = sphi 0, %s118
      %s136 = sphi 0, %s136
      %s138 = sphi 0, %s136
      %s139 = sphi 0, %s138
      %s153 = sphi 0, %s139
      %s157 = sphi 0, %s157
      %s159 = sphi 0, %s157
      %s160 = sphi 0, %s159
      %s174 = sphi 0, %s160
      %s180 = sphi 0, %s182
      %s183 = sphi 0, %s180
      %s184 = sphi 0, %s183
      %s200 = sphi 0, %s184
    $region4: #{text_classifier_forward.1} parent=1 // loop_header_branch
      %21 = sbr.rel (%p19) target = $region8
    $region5: #{text_classifier_forward.1} parent=1 // loop_body
      %s23 = ssub.s32 %s18, 1
      %s24 = ssub.s32 %s18, 2
      %s25 = sadd.s32 %s18, 1
      %s26 = ssub.s32 %s18, %s25
      %p27 = scmp.eq.s32.totalorder %s26, 0
      %s29 = sadd.s32 %s28, 1
      %s30 = scalar_select %p27, %s28, %s29
      %p33 = pneg %p27
      %p34 = scmp.eq.s32.totalorder %s18, 1
      %p35 = por %p33, %p34
      %p36 = scmp.ne.s32.totalorder %s28, %s31
      %p37 = scmp.eq.s32.totalorder %s18, 0
      %p38 = por %p36, %p37
      %p39 = scmp.ne.s32.totalorder %s28, %s31
      %p40 = scmp.eq.s32.totalorder %s23, 1
      %p41 = por %p39, %p40
      %p42 = scmp.ne.s32.totalorder %s31, %s32
      %p43 = scmp.eq.s32.totalorder %s23, 0
      %p44 = por %p42, %p43
      %p45 = scmp.ne.s32.totalorder %s31, %s32
      %p46 = scmp.eq.s32.totalorder %s24, 1
      %p47 = por %p45, %p46
      %p49 = scmp.ne.s32.totalorder %s32, %s48
      %p50 = scmp.eq.s32.totalorder %s24, 0
      %p51 = por %p49, %p50
      %s53 = sadd.s32 %s52, 1
      %p56 = scmp.eq.s32.totalorder %s18, 1
      %p57 = scmp.ne.s32.totalorder %s52, %s54
      %p58 = scmp.eq.s32.totalorder %s18, 0
      %p59 = por %p57, %p58
      %p60 = scmp.ne.s32.totalorder %s52, %s54
      %p61 = scmp.eq.s32.totalorder %s23, 1
      %p62 = por %p60, %p61
      %p63 = scmp.ne.s32.totalorder %s54, %s55
      %p64 = scmp.eq.s32.totalorder %s23, 0
      %p65 = por %p63, %p64
      %p66 = scmp.ne.s32.totalorder %s54, %s55
      %p67 = scmp.eq.s32.totalorder %s24, 1
      %p68 = por %p66, %p67
      %p70 = scmp.ne.s32.totalorder %s55, %s69
      %p71 = scmp.eq.s32.totalorder %s24, 0
      %p72 = por %p70, %p71
      %s74 = sadd.s32 %s73, 1
      %p77 = scmp.eq.s32.totalorder %s18, 1
      %p78 = scmp.ne.s32.totalorder %s73, %s75
      %p79 = scmp.eq.s32.totalorder %s18, 0
      %p80 = por %p78, %p79
      %p81 = scmp.ne.s32.totalorder %s73, %s75
      %p82 = scmp.eq.s32.totalorder %s23, 1
      %p83 = por %p81, %p82
      %p84 = scmp.ne.s32.totalorder %s75, %s76
      %p85 = scmp.eq.s32.totalorder %s23, 0
      %p86 = por %p84, %p85
      %p87 = scmp.ne.s32.totalorder %s75, %s76
      %p88 = scmp.eq.s32.totalorder %s24, 1
      %p89 = por %p87, %p88
      %p91 = scmp.ne.s32.totalorder %s76, %s90
      %p92 = scmp.eq.s32.totalorder %s24, 0
      %p93 = por %p91, %p92
      %s95 = sadd.s32 %s94, 1
      %p98 = scmp.eq.s32.totalorder %s18, 1
      %p99 = scmp.ne.s32.totalorder %s94, %s96
      %p100 = scmp.eq.s32.totalorder %s18, 0
      %p101 = por %p99, %p100
      %p102 = scmp.ne.s32.totalorder %s94, %s96
      %p103 = scmp.eq.s32.totalorder %s23, 1
      %p104 = por %p102, %p103
      %p105 = scmp.ne.s32.totalorder %s96, %s97
      %p106 = scmp.eq.s32.totalorder %s23, 0
      %p107 = por %p105, %p106
      %p108 = scmp.ne.s32.totalorder %s96, %s97
      %p109 = scmp.eq.s32.totalorder %s24, 1
      %p110 = por %p108, %p109
      %p112 = scmp.ne.s32.totalorder %s97, %s111
      %p113 = scmp.eq.s32.totalorder %s24, 0
      %p114 = por %p112, %p113
      %s116 = sadd.s32 %s115, 1
      %p119 = scmp.eq.s32.totalorder %s18, 1
      %p120 = scmp.ne.s32.totalorder %s115, %s117
      %p121 = scmp.eq.s32.totalorder %s18, 0
      %p122 = por %p120, %p121
      %p123 = scmp.ne.s32.totalorder %s115, %s117
      %p124 = scmp.eq.s32.totalorder %s23, 1
      %p125 = por %p123, %p124
      %p126 = scmp.ne.s32.totalorder %s117, %s118
      %p127 = scmp.eq.s32.totalorder %s23, 0
      %p128 = por %p126, %p127
      %p129 = scmp.ne.s32.totalorder %s117, %s118
      %p130 = scmp.eq.s32.totalorder %s24, 1
      %p131 = por %p129, %p130
      %p133 = scmp.ne.s32.totalorder %s118, %s132
      %p134 = scmp.eq.s32.totalorder %s24, 0
      %p135 = por %p133, %p134
      %s137 = sadd.s32 %s136, 1
      %p140 = scmp.eq.s32.totalorder %s18, 1
      %p141 = scmp.ne.s32.totalorder %s136, %s138
      %p142 = scmp.eq.s32.totalorder %s18, 0
      %p143 = por %p141, %p142
      %p144 = scmp.ne.s32.totalorder %s136, %s138
      %p145 = scmp.eq.s32.totalorder %s23, 1
      %p146 = por %p144, %p145
      %p147 = scmp.ne.s32.totalorder %s138, %s139
      %p148 = scmp.eq.s32.totalorder %s23, 0
      %p149 = por %p147, %p148
      %p150 = scmp.ne.s32.totalorder %s138, %s139
      %p151 = scmp.eq.s32.totalorder %s24, 1
      %p152 = por %p150, %p151
      %p154 = scmp.ne.s32.totalorder %s139, %s153
      %p155 = scmp.eq.s32.totalorder %s24, 0
      %p156 = por %p154, %p155
      %s158 = sadd.s32 %s157, 1
      %p161 = scmp.eq.s32.totalorder %s18, 1
      %p162 = scmp.ne.s32.totalorder %s157, %s159
      %p163 = scmp.eq.s32.totalorder %s18, 0
      %p164 = por %p162, %p163
      %p165 = scmp.ne.s32.totalorder %s157, %s159
      %p166 = scmp.eq.s32.totalorder %s23, 1
      %p167 = por %p165, %p166
      %p168 = scmp.ne.s32.totalorder %s159, %s160
      %p169 = scmp.eq.s32.totalorder %s23, 0
      %p170 = por %p168, %p169
      %p171 = scmp.ne.s32.totalorder %s159, %s160
      %p172 = scmp.eq.s32.totalorder %s24, 1
      %p173 = por %p171, %p172
      %p175 = scmp.ne.s32.totalorder %s160, %s174
      %p176 = scmp.eq.s32.totalorder %s24, 0
      %p177 = por %p175, %p176
      %s178 = ssub.s32 %s18, %s25
      %p179 = scmp.eq.s32.totalorder %s178, 0
      %s181 = sadd.s32 %s180, 1
      %s182 = scalar_select %p179, %s180, %s181
      %p185 = pneg %p179
      %p186 = scmp.eq.s32.totalorder %s18, 1
      %p187 = por %p185, %p186
      %p188 = scmp.ne.s32.totalorder %s180, %s183
      %p189 = scmp.eq.s32.totalorder %s18, 0
      %p190 = por %p188, %p189
      %p191 = scmp.ne.s32.totalorder %s180, %s183
      %p192 = scmp.eq.s32.totalorder %s23, 1
      %p193 = por %p191, %p192
      %p194 = scmp.ne.s32.totalorder %s183, %s184
      %p195 = scmp.eq.s32.totalorder %s23, 0
      %p196 = por %p194, %p195
      %p197 = scmp.ne.s32.totalorder %s183, %s184
      %p198 = scmp.eq.s32.totalorder %s24, 1
      %p199 = por %p197, %p198
      %p201 = scmp.ne.s32.totalorder %s184, %s200
      %p202 = scmp.eq.s32.totalorder %s24, 0
      %p203 = por %p201, %p202
      %p204 = scmp.le.s32.totalorder 1, %s18
      %p205 = scmp.lt.s32.totalorder %s18, 3
      %p206 = pnand %p204, %p205
      %p207 = pneg %p206
      // Predicated region
      $region9: #{text_classifier_forward.1} parent=5 // pred_check
        _
      $region10: #{text_classifier_forward.1} parent=5 // pred_check_branch
        %209 = sbr.rel (%p206) target = $region12
      $region11: #{text_classifier_forward.1} parent=5 // pred_region
        %s210 = ssub.s32 %s18, 1
        // Predicated region
        $region13: #{text_classifier_forward.1} parent=11 // pred_check
          %p211 = pneg %p65
        $region14: #{text_classifier_forward.1} parent=11 // pred_check_branch
          %213 = sbr.rel (%p211) target = $region16
        $region15: #{text_classifier_forward.1} parent=11 // pred_region
          _
        $region16: #{text_classifier_forward.1} parent=11 // pred_fallthru
          _
        // Predicated region
        $region17: #{text_classifier_forward.1} parent=11 // pred_check
          %p214 = pneg %p86
        $region18: #{text_classifier_forward.1} parent=11 // pred_check_branch
          %216 = sbr.rel (%p214) target = $region20
        $region19: #{text_classifier_forward.1} parent=11 // pred_region
          _
        $region20: #{text_classifier_forward.1} parent=11 // pred_fallthru
          _
        // Predicated region
        $region21: #{text_classifier_forward.1} parent=11 // pred_check
          %p217 = pneg %p107
        $region22: #{text_classifier_forward.1} parent=11 // pred_check_branch
          %219 = sbr.rel (%p217) target = $region24
        $region23: #{text_classifier_forward.1} parent=11 // pred_region
          _
        $region24: #{text_classifier_forward.1} parent=11 // pred_fallthru
          _
        // Predicated region
        $region25: #{text_classifier_forward.1} parent=11 // pred_check
          %p220 = pneg %p128
        $region26: #{text_classifier_forward.1} parent=11 // pred_check_branch
          %222 = sbr.rel (%p220) target = $region28
        $region27: #{text_classifier_forward.1} parent=11 // pred_region
          _
        $region28: #{text_classifier_forward.1} parent=11 // pred_fallthru
          _
        // Predicated region
        $region29: #{text_classifier_forward.1} parent=11 // pred_check
          %p223 = pneg %p149
        $region30: #{text_classifier_forward.1} parent=11 // pred_check_branch
          %225 = sbr.rel (%p223) target = $region32
        $region31: #{text_classifier_forward.1} parent=11 // pred_region
          _
        $region32: #{text_classifier_forward.1} parent=11 // pred_fallthru
          _
        // Predicated region
        $region33: #{text_classifier_forward.1} parent=11 // pred_check
          %p226 = pneg %p170
        $region34: #{text_classifier_forward.1} parent=11 // pred_check_branch
          %228 = sbr.rel (%p226) target = $region36
        $region35: #{text_classifier_forward.1} parent=11 // pred_region
          _
        $region36: #{text_classifier_forward.1} parent=11 // pred_fallthru
          _
      $region12: #{text_classifier_forward.1} parent=5 // pred_fallthru
        _
      %p229 = scmp.lt.s32.totalorder %s18, 2
      // Predicated region
      $region37: #{text_classifier_forward.1} parent=5 // pred_check
        %p230 = pneg %p229
      $region38: #{text_classifier_forward.1} parent=5 // pred_check_branch
        %232 = sbr.rel (%p230) target = $region40
      $region39: #{text_classifier_forward.1} parent=5 // pred_region
        // Predicated region
        $region41: #{text_classifier_forward.1} parent=39 // pred_check
          %p233 = pneg %p38
        $region42: #{text_classifier_forward.1} parent=39 // pred_check_branch
          %235 = sbr.rel (%p233) target = $region44
        $region43: #{text_classifier_forward.1} parent=39 // pred_region
          %s236 = smul.u32 16, %s18
          %p237 = scmp.lt.s32.totalorder %s236, 31
          %s238 = scalar_select %p237, %s236, 31
          %s239 = smul.addr %s238, 2
          %s240 = smul.addr %s239, 4
          %s241 = scalar_lea.vmem %s0, %s240
          %s242 = smul.u32 16, %s18
        $region44: #{text_classifier_forward.1} parent=39 // pred_fallthru
          _
      $region40: #{text_classifier_forward.1} parent=5 // pred_fallthru
        _
      %p243 = scmp.le.s32.totalorder 1, %s18
      %p244 = scmp.lt.s32.totalorder %s18, 3
      %p245 = pnand %p243, %p244
      %p246 = pneg %p245
      // Predicated region
      $region45: #{text_classifier_forward.1} parent=5 // pred_check
        _
      $region46: #{text_classifier_forward.1} parent=5 // pred_check_branch
        %248 = sbr.rel (%p245) target = $region48
      $region47: #{text_classifier_forward.1} parent=5 // pred_region
        %s249 = ssub.s32 %s18, 1
        %s250 = smul.u32 16, %s23
        %p251 = scmp.lt.s32.totalorder %s250, 31
        %s252 = scalar_select %p251, %s250, 31
        %s253 = smul.addr %s252, 2
        %s254 = smul.addr %s253, 4
        %s255 = scalar_lea.vmem %s0, %s254
        %p256 = pneg %p44
        %p257 = pneg %p41
        %p258 = pneg %p65
        %p259 = pneg %p62
        %p260 = pneg %p86
        %p261 = pneg %p83
        %p262 = pneg %p107
        %p263 = pneg %p104
        %p264 = pneg %p128
        %p265 = pneg %p125
        %p266 = pneg %p149
        %p267 = pneg %p146
        %p268 = pneg %p170
        %p269 = pneg %p167
        %p270 = pneg %p196
        %p271 = pneg %p193
        %s272 = sand.u32 %s183, 1
        %s273 = scalar_lea.sflag [#allocation4], %s272
        %s274 = sand.u32 %s183, 1
        %s275 = scalar_lea.vmem [#allocation3], %s274
        %s276 = smul.u32 16, %s23
        %p277 = scmp.lt.s32.totalorder %s276, 31
        %s278 = scalar_select %p277, %s276, 31
        %s279 = smul.addr %s278, 2
        %s280 = smul.addr %s279, 4
        %s281 = scalar_lea.vmem %s0, %s280
        %s282 = smul.u32 16, %s23
        %v284 = vld [vmem:[%s281] sm:$0xff]
        %v285 = vld [vmem:[%s281 + $0x8] sm:$0xff]
        %v286 = vld [vmem:[%s281 + $0x10] sm:$0xff]
        %v287 = vld [vmem:[%s281 + $0x18] sm:$0xff]
        %v288 = vld [vmem:[%s281 + $0x20] sm:$0xff]
        %v289 = vld [vmem:[%s281 + $0x28] sm:$0xff]
        %v290 = vld [vmem:[%s281 + $0x30] sm:$0xff]
        %v291 = vld [vmem:[%s281 + $0x38] sm:$0xff]
        %v292 = vld [vmem:[%s281 + $0x40] sm:$0xff]
        %v293 = vld [vmem:[%s281 + $0x48] sm:$0xff]
        %v294 = vld [vmem:[%s281 + $0x50] sm:$0xff]
        %v295 = vld [vmem:[%s281 + $0x58] sm:$0xff]
        %v296 = vld [vmem:[%s281 + $0x60] sm:$0xff]
        %v297 = vld [vmem:[%s281 + $0x68] sm:$0xff]
        %v298 = vld [vmem:[%s281 + $0x70] sm:$0xff]
        %v299 = vld [vmem:[%s281 + $0x78] sm:$0xff]
        %v300 = vld [vmem:[%s1] sm:$0xf]
        %v301 = vld [vmem:[%s1 + $0x4] sm:$0xf]
        %v302 = vld [vmem:[%s1 + $0x8] sm:$0xf]
        %v303 = vld [vmem:[%s1 + $0xc] sm:$0xf]
        %v304 = vld [vmem:[%s1 + $0x10] sm:$0xf]
        %v305 = vld [vmem:[%s1 + $0x14] sm:$0xf]
        %v306 = vld [vmem:[%s1 + $0x18] sm:$0xf]
        %v307 = vld [vmem:[%s1 + $0x1c] sm:$0xf]
        %v308 = vld [vmem:[%s1 + $0x20] sm:$0xf]
        %v309 = vld [vmem:[%s1 + $0x24] sm:$0xf]
        %v310 = vld [vmem:[%s1 + $0x28] sm:$0xf]
        %v311 = vld [vmem:[%s1 + $0x2c] sm:$0xf]
        %v312 = vld [vmem:[%s1 + $0x30] sm:$0xf]
        %v313 = vld [vmem:[%s1 + $0x34] sm:$0xf]
        %v314 = vld [vmem:[%s1 + $0x38] sm:$0xf]
        %v315 = vld [vmem:[%s1 + $0x3c] sm:$0xf]
        %v316 = vld [vmem:[%s1 + $0x40] sm:$0xf]
        %v317 = vld [vmem:[%s1 + $0x44] sm:$0xf]
        %v318 = vld [vmem:[%s1 + $0x48] sm:$0xf]
        %v319 = vld [vmem:[%s1 + $0x4c] sm:$0xf]
        %v320 = vld [vmem:[%s1 + $0x50] sm:$0xf]
        %v321 = vld [vmem:[%s1 + $0x54] sm:$0xf]
        %v322 = vld [vmem:[%s1 + $0x58] sm:$0xf]
        %v323 = vld [vmem:[%s1 + $0x5c] sm:$0xf]
        %v324 = vld [vmem:[%s1 + $0x60] sm:$0xf]
        %v325 = vld [vmem:[%s1 + $0x64] sm:$0xf]
        %v326 = vld [vmem:[%s1 + $0x68] sm:$0xf]
        %v327 = vld [vmem:[%s1 + $0x6c] sm:$0xf]
        %v328 = vld [vmem:[%s1 + $0x70] sm:$0xf]
        %v329 = vld [vmem:[%s1 + $0x74] sm:$0xf]
        %v330 = vld [vmem:[%s1 + $0x78] sm:$0xf]
        %v331 = vld [vmem:[%s1 + $0x7c] sm:$0xf]
        %v332 = vld [vmem:[%s2] sm:$0x1]
        %v334 = vlaneseq
        %v335 = vshrl.u32 %v334, 7
        %v336 = vsub.s32 0, %v335
        %v337 = vrot.slane %v332, %v336
        %v355 = vunpack.c.l.b16 %v284
        %v356 = vunpack.c.h.b16 %v284
        %v357 = vunpack.c.l.b16 %v285
        %v358 = vunpack.c.h.b16 %v285
        %v359 = vunpack.c.l.b16 %v286
        %v360 = vunpack.c.h.b16 %v286
        %v361 = vunpack.c.l.b16 %v287
        %v362 = vunpack.c.h.b16 %v287
        %v363 = vunpack.c.l.b16 %v288
        %v364 = vunpack.c.h.b16 %v288
        %v365 = vunpack.c.l.b16 %v289
        %v366 = vunpack.c.h.b16 %v289
        %v367 = vunpack.c.l.b16 %v290
        %v368 = vunpack.c.h.b16 %v290
        %v369 = vunpack.c.l.b16 %v291
        %v370 = vunpack.c.h.b16 %v291
        %v371 = vunpack.c.l.b16 %v292
        %v372 = vunpack.c.h.b16 %v292
        %v373 = vunpack.c.l.b16 %v293
        %v374 = vunpack.c.h.b16 %v293
        %v375 = vunpack.c.l.b16 %v294
        %v376 = vunpack.c.h.b16 %v294
        %v377 = vunpack.c.l.b16 %v295
        %v378 = vunpack.c.h.b16 %v295
        %v379 = vunpack.c.l.b16 %v296
        %v380 = vunpack.c.h.b16 %v296
        %v381 = vunpack.c.l.b16 %v297
        %v382 = vunpack.c.h.b16 %v297
        %v383 = vunpack.c.l.b16 %v298
        %v384 = vunpack.c.h.b16 %v298
        %v385 = vunpack.c.l.b16 %v299
        %v386 = vunpack.c.h.b16 %v299
        %v387 = vpack.c.b16 %v357, %v355
        %v388 = vpack.c.b16 %v358, %v356
        %v389 = vpack.c.b16 %v361, %v359
        %v390 = vpack.c.b16 %v362, %v360
        %v391 = vpack.c.b16 %v365, %v363
        %v392 = vpack.c.b16 %v366, %v364
        %v393 = vpack.c.b16 %v369, %v367
        %v394 = vpack.c.b16 %v370, %v368
        %v395 = vpack.c.b16 %v373, %v371
        %v396 = vpack.c.b16 %v374, %v372
        %v397 = vpack.c.b16 %v377, %v375
        %v398 = vpack.c.b16 %v378, %v376
        %v399 = vpack.c.b16 %v381, %v379
        %v400 = vpack.c.b16 %v382, %v380
        %v401 = vpack.c.b16 %v385, %v383
        %v402 = vpack.c.b16 %v386, %v384
        %v451 = vunpack.c.l.b16 %v300
        %v452 = vunpack.c.l.b16 %v301
        %v453 = vunpack.c.l.b16 %v302
        %v454 = vunpack.c.l.b16 %v303
        %v455 = vunpack.c.l.b16 %v304
        %v456 = vunpack.c.l.b16 %v305
        %v457 = vunpack.c.l.b16 %v306
        %v458 = vunpack.c.l.b16 %v307
        %v459 = vunpack.c.l.b16 %v308
        %v460 = vunpack.c.l.b16 %v309
        %v461 = vunpack.c.l.b16 %v310
        %v462 = vunpack.c.l.b16 %v311
        %v463 = vunpack.c.l.b16 %v312
        %v464 = vunpack.c.l.b16 %v313
        %v465 = vunpack.c.l.b16 %v314
        %v466 = vunpack.c.l.b16 %v315
        %v467 = vunpack.c.l.b16 %v316
        %v468 = vunpack.c.l.b16 %v317
        %v469 = vunpack.c.l.b16 %v318
        %v470 = vunpack.c.l.b16 %v319
        %v471 = vunpack.c.l.b16 %v320
        %v472 = vunpack.c.l.b16 %v321
        %v473 = vunpack.c.l.b16 %v322
        %v474 = vunpack.c.l.b16 %v323
        %v475 = vunpack.c.l.b16 %v324
        %v476 = vunpack.c.l.b16 %v325
        %v477 = vunpack.c.l.b16 %v326
        %v478 = vunpack.c.l.b16 %v327
        %v479 = vunpack.c.l.b16 %v328
        %v480 = vunpack.c.l.b16 %v329
        %v481 = vunpack.c.l.b16 %v330
        %v482 = vunpack.c.l.b16 %v331
        %v483 = vpack.c.b16 %v452, %v451
        %v484 = vpack.c.b16 %v454, %v453
        %v485 = vpack.c.b16 %v456, %v455
        %v486 = vpack.c.b16 %v458, %v457
        %v487 = vpack.c.b16 %v460, %v459
        %v488 = vpack.c.b16 %v462, %v461
        %v489 = vpack.c.b16 %v464, %v463
        %v490 = vpack.c.b16 %v466, %v465
        %v491 = vpack.c.b16 %v468, %v467
        %v492 = vpack.c.b16 %v470, %v469
        %v493 = vpack.c.b16 %v472, %v471
        %v494 = vpack.c.b16 %v474, %v473
        %v495 = vpack.c.b16 %v476, %v475
        %v496 = vpack.c.b16 %v478, %v477
        %v497 = vpack.c.b16 %v480, %v479
        %v498 = vpack.c.b16 %v482, %v481
        %515 = vmatprep.subr.bf16.mxu0 0
        %516 = vmatpush1.bf16.msra.mxu0 %v490
        %517 = vmatprep.subr.bf16.mxu0 0
        %518 = vmatpush1.bf16.msra.mxu0 %v489
        %519 = vmatprep.subr.bf16.mxu0 0
        %520 = vmatpush1.bf16.msra.mxu0 %v488
        %521 = vmatprep.subr.bf16.mxu0 0
        %522 = vmatpush1.bf16.msra.mxu0 %v487
        %523 = vmatprep.subr.bf16.mxu0 0
        %524 = vmatpush1.bf16.msra.mxu0 %v486
        %525 = vmatprep.subr.bf16.mxu0 0
        %526 = vmatpush1.bf16.msra.mxu0 %v485
        %527 = vmatprep.subr.bf16.mxu0 0
        %528 = vmatpush1.bf16.msra.mxu0 %v484
        %529 = vmatprep.subr.bf16.mxu0 0
        %530 = vmatpush1.bf16.msra.mxu0 %v483
        %531 = vmatprep.subr.bf16.mxu0 0
        %532 = vmatpush2.bf16.msra.mxu0 %v498
        %533 = vmatprep.subr.bf16.mxu0 0
        %534 = vmatpush2.bf16.msra.mxu0 %v497
        %535 = vmatprep.subr.bf16.mxu0 0
        %536 = vmatpush2.bf16.msra.mxu0 %v496
        %537 = vmatprep.subr.bf16.mxu0 0
        %538 = vmatpush2.bf16.msra.mxu0 %v495
        %539 = vmatprep.subr.bf16.mxu0 0
        %540 = vmatpush2.bf16.msra.mxu0 %v494
        %541 = vmatprep.subr.bf16.mxu0 0
        %542 = vmatpush2.bf16.msra.mxu0 %v493
        %543 = vmatprep.subr.bf16.mxu0 0
        %544 = vmatpush2.bf16.msra.mxu0 %v492
        %545 = vmatprep.subr.bf16.mxu0 0
        %546 = vmatpush2.bf16.msra.mxu0 %v491
        %547 = vmatprep.mubr.bf16.mxu0 %v388
        %548 = vmatmul.mubr.bf16.gmra.mxu0 %v387
        %v549 = vpop.f32.mrf.mxu0
        %v550 = vadd.f32 %v337, %v549
        %v551 = vpop.f32.mrf.mxu0
        %v552 = vpop.f32.mrf.mxu0
        %v553 = vadd.f32 %v337, %v552
        %v554 = vpop.f32.mrf.mxu0
        %555 = vmatprep.mubr.bf16.mxu0 %v390
        %556 = vmatmul.mubr.bf16.gmra.mxu0 %v389
        %v557 = vpop.f32.mrf.mxu0
        %v558 = vadd.f32 %v337, %v557
        %v559 = vpop.f32.mrf.mxu0
        %v560 = vpop.f32.mrf.mxu0
        %v561 = vadd.f32 %v337, %v560
        %v562 = vpop.f32.mrf.mxu0
        %563 = vmatprep.mubr.bf16.mxu0 %v392
        %564 = vmatmul.mubr.bf16.gmra.mxu0 %v391
        %v565 = vpop.f32.mrf.mxu0
        %v566 = vadd.f32 %v337, %v565
        %v567 = vpop.f32.mrf.mxu0
        %v568 = vpop.f32.mrf.mxu0
        %v569 = vadd.f32 %v337, %v568
        %v570 = vpop.f32.mrf.mxu0
        %571 = vmatprep.mubr.bf16.mxu0 %v394
        %572 = vmatmul.mubr.bf16.gmra.mxu0 %v393
        %v573 = vpop.f32.mrf.mxu0
        %v574 = vadd.f32 %v337, %v573
        %v575 = vpop.f32.mrf.mxu0
        %v576 = vpop.f32.mrf.mxu0
        %v577 = vadd.f32 %v337, %v576
        %v578 = vpop.f32.mrf.mxu0
        %579 = vmatprep.mubr.bf16.mxu0 %v396
        %580 = vmatmul.mubr.bf16.gmra.mxu0 %v395
        %v581 = vpop.f32.mrf.mxu0
        %v582 = vadd.f32 %v337, %v581
        %v583 = vpop.f32.mrf.mxu0
        %v584 = vpop.f32.mrf.mxu0
        %v585 = vadd.f32 %v337, %v584
        %v586 = vpop.f32.mrf.mxu0
        %587 = vmatprep.mubr.bf16.mxu0 %v398
        %588 = vmatmul.mubr.bf16.gmra.mxu0 %v397
        %v589 = vpop.f32.mrf.mxu0
        %v590 = vadd.f32 %v337, %v589
        %v591 = vpop.f32.mrf.mxu0
        %v592 = vpop.f32.mrf.mxu0
        %v593 = vadd.f32 %v337, %v592
        %v594 = vpop.f32.mrf.mxu0
        %595 = vmatprep.mubr.bf16.mxu0 %v400
        %596 = vmatmul.mubr.bf16.gmra.mxu0 %v399
        %v597 = vpop.f32.mrf.mxu0
        %v598 = vadd.f32 %v337, %v597
        %v599 = vpop.f32.mrf.mxu0
        %v600 = vpop.f32.mrf.mxu0
        %v601 = vadd.f32 %v337, %v600
        %v602 = vpop.f32.mrf.mxu0
        %603 = vmatprep.mubr.bf16.mxu0 %v402
        %604 = vmatmul.mubr.bf16.gmra.mxu0 %v401
        %v605 = vpop.f32.mrf.mxu0
        %v606 = vadd.f32 %v337, %v605
        %v607 = vpop.f32.mrf.mxu0
        %v608 = vpop.f32.mrf.mxu0
        %v609 = vadd.f32 %v337, %v608
        %v610 = vpop.f32.mrf.mxu0
        %611 = vdwg.mxu0
        %v612 = vmax.f32 %v550, 0.0
        %v613 = vmax.f32 %v553, 0.0
        %v614 = vmax.f32 %v558, 0.0
        %v615 = vmax.f32 %v561, 0.0
        %v616 = vmax.f32 %v566, 0.0
        %v617 = vmax.f32 %v569, 0.0
        %v618 = vmax.f32 %v574, 0.0
        %v619 = vmax.f32 %v577, 0.0
        %v620 = vmax.f32 %v582, 0.0
        %v621 = vmax.f32 %v585, 0.0
        %v622 = vmax.f32 %v590, 0.0
        %v623 = vmax.f32 %v593, 0.0
        %v624 = vmax.f32 %v598, 0.0
        %v625 = vmax.f32 %v601, 0.0
        %v626 = vmax.f32 %v606, 0.0
        %v627 = vmax.f32 %v609, 0.0
        %v628 = vpack.c.bf16 %v613, %v612
        %v629 = vpack.c.bf16 %v615, %v614
        %v630 = vpack.c.bf16 %v617, %v616
        %v631 = vpack.c.bf16 %v619, %v618
        %v632 = vpack.c.bf16 %v621, %v620
        %v633 = vpack.c.bf16 %v623, %v622
        %v634 = vpack.c.bf16 %v625, %v624
        %v635 = vpack.c.bf16 %v627, %v626
        %v636 = vld [vmem:[%s3] sm:$0xf]
        %v637 = vld [vmem:[%s3 + $0x4] sm:$0xf]
        %v638 = vld [vmem:[%s3 + $0x8] sm:$0xf]
        %v639 = vld [vmem:[%s3 + $0xc] sm:$0xf]
        %v640 = vld [vmem:[%s3 + $0x10] sm:$0xf]
        %v641 = vld [vmem:[%s3 + $0x14] sm:$0xf]
        %v642 = vld [vmem:[%s3 + $0x18] sm:$0xf]
        %v643 = vld [vmem:[%s3 + $0x1c] sm:$0xf]
        %v644 = vld [vmem:[%s3 + $0x20] sm:$0xf]
        %v645 = vld [vmem:[%s3 + $0x24] sm:$0xf]
        %v646 = vld [vmem:[%s3 + $0x28] sm:$0xf]
        %v647 = vld [vmem:[%s3 + $0x2c] sm:$0xf]
        %v648 = vld [vmem:[%s3 + $0x30] sm:$0xf]
        %v649 = vld [vmem:[%s3 + $0x34] sm:$0xf]
        %v650 = vld [vmem:[%s3 + $0x38] sm:$0xf]
        %v651 = vld [vmem:[%s3 + $0x3c] sm:$0xf]
        %v652 = vld [vmem:[%s4] sm:$0x1]
        %v654 = vlaneseq
        %v655 = vshrl.u32 %v654, 7
        %v656 = vsub.s32 0, %v655
        %v657 = vrot.slane %v652, %v656
        %v675 = vunpack.c.l.b16 %v636
        %v676 = vunpack.c.l.b16 %v637
        %v677 = vunpack.c.l.b16 %v638
        %v678 = vunpack.c.l.b16 %v639
        %v679 = vunpack.c.l.b16 %v640
        %v680 = vunpack.c.l.b16 %v641
        %v681 = vunpack.c.l.b16 %v642
        %v682 = vunpack.c.l.b16 %v643
        %v683 = vunpack.c.l.b16 %v644
        %v684 = vunpack.c.l.b16 %v645
        %v685 = vunpack.c.l.b16 %v646
        %v686 = vunpack.c.l.b16 %v647
        %v687 = vunpack.c.l.b16 %v648
        %v688 = vunpack.c.l.b16 %v649
        %v689 = vunpack.c.l.b16 %v650
        %v690 = vunpack.c.l.b16 %v651
        %v691 = vpack.c.b16 %v676, %v675
        %v692 = vpack.c.b16 %v678, %v677
        %v693 = vpack.c.b16 %v680, %v679
        %v694 = vpack.c.b16 %v682, %v681
        %v695 = vpack.c.b16 %v684, %v683
        %v696 = vpack.c.b16 %v686, %v685
        %v697 = vpack.c.b16 %v688, %v687
        %v698 = vpack.c.b16 %v690, %v689
        %707 = vmatprep.subr.bf16.mxu0 0
        %708 = vmatpush1.bf16.msra.mxu0 %v698
        %709 = vmatprep.subr.bf16.mxu0 0
        %710 = vmatpush1.bf16.msra.mxu0 %v697
        %711 = vmatprep.subr.bf16.mxu0 0
        %712 = vmatpush1.bf16.msra.mxu0 %v696
        %713 = vmatprep.subr.bf16.mxu0 0
        %714 = vmatpush1.bf16.msra.mxu0 %v695
        %715 = vmatprep.subr.bf16.mxu0 0
        %716 = vmatpush1.bf16.msra.mxu0 %v694
        %717 = vmatprep.subr.bf16.mxu0 0
        %718 = vmatpush1.bf16.msra.mxu0 %v693
        %719 = vmatprep.subr.bf16.mxu0 0
        %720 = vmatpush1.bf16.msra.mxu0 %v692
        %721 = vmatprep.subr.bf16.mxu0 0
        %722 = vmatpush1.bf16.msra.mxu0 %v691
        %723 = vmatprep.subr.bf16.mxu0 0
        %724 = vmatpush2.bf16.msra.mxu0 0
        %725 = vmatprep.subr.bf16.mxu0 0
        %726 = vmatpush2.bf16.msra.mxu0 0
        %727 = vmatprep.subr.bf16.mxu0 0
        %728 = vmatpush2.bf16.msra.mxu0 0
        %729 = vmatprep.subr.bf16.mxu0 0
        %730 = vmatpush2.bf16.msra.mxu0 0
        %731 = vmatprep.subr.bf16.mxu0 0
        %732 = vmatpush2.bf16.msra.mxu0 0
        %733 = vmatprep.subr.bf16.mxu0 0
        %734 = vmatpush2.bf16.msra.mxu0 0
        %735 = vmatprep.subr.bf16.mxu0 0
        %736 = vmatpush2.bf16.msra.mxu0 0
        %737 = vmatprep.subr.bf16.mxu0 0
        %738 = vmatpush2.bf16.msra.mxu0 0
        %739 = vmatprep.mubr.bf16.mxu0 0
        %740 = vmatmul.mubr.bf16.gmra.mxu0 %v628
        %v741 = vpop.f32.mrf.mxu0
        %v742 = vadd.f32 %v657, %v741
        %v743 = vpop.f32.mrf.mxu0
        %v744 = vpop.f32.mrf.mxu0
        %v745 = vadd.f32 %v657, %v744
        %v746 = vpop.f32.mrf.mxu0
        %747 = vmatprep.mubr.bf16.mxu0 0
        %748 = vmatmul.mubr.bf16.gmra.mxu0 %v629
        %v749 = vpop.f32.mrf.mxu0
        %v750 = vadd.f32 %v657, %v749
        %v751 = vpop.f32.mrf.mxu0
        %v752 = vpop.f32.mrf.mxu0
        %v753 = vadd.f32 %v657, %v752
        %v754 = vpop.f32.mrf.mxu0
        %755 = vmatprep.mubr.bf16.mxu0 0
        %756 = vmatmul.mubr.bf16.gmra.mxu0 %v630
        %v757 = vpop.f32.mrf.mxu0
        %v758 = vadd.f32 %v657, %v757
        %v759 = vpop.f32.mrf.mxu0
        %v760 = vpop.f32.mrf.mxu0
        %v761 = vadd.f32 %v657, %v760
        %v762 = vpop.f32.mrf.mxu0
        %763 = vmatprep.mubr.bf16.mxu0 0
        %764 = vmatmul.mubr.bf16.gmra.mxu0 %v631
        %v765 = vpop.f32.mrf.mxu0
        %v766 = vadd.f32 %v657, %v765
        %v767 = vpop.f32.mrf.mxu0
        %v768 = vpop.f32.mrf.mxu0
        %v769 = vadd.f32 %v657, %v768
        %v770 = vpop.f32.mrf.mxu0
        %771 = vmatprep.mubr.bf16.mxu0 0
        %772 = vmatmul.mubr.bf16.gmra.mxu0 %v632
        %v773 = vpop.f32.mrf.mxu0
        %v774 = vadd.f32 %v657, %v773
        %v775 = vpop.f32.mrf.mxu0
        %v776 = vpop.f32.mrf.mxu0
        %v777 = vadd.f32 %v657, %v776
        %v778 = vpop.f32.mrf.mxu0
        %779 = vmatprep.mubr.bf16.mxu0 0
        %780 = vmatmul.mubr.bf16.gmra.mxu0 %v633
        %v781 = vpop.f32.mrf.mxu0
        %v782 = vadd.f32 %v657, %v781
        %v783 = vpop.f32.mrf.mxu0
        %v784 = vpop.f32.mrf.mxu0
        %v785 = vadd.f32 %v657, %v784
        %v786 = vpop.f32.mrf.mxu0
        %787 = vmatprep.mubr.bf16.mxu0 0
        %788 = vmatmul.mubr.bf16.gmra.mxu0 %v634
        %v789 = vpop.f32.mrf.mxu0
        %v790 = vadd.f32 %v657, %v789
        %v791 = vpop.f32.mrf.mxu0
        %v792 = vpop.f32.mrf.mxu0
        %v793 = vadd.f32 %v657, %v792
        %v794 = vpop.f32.mrf.mxu0
        %795 = vmatprep.mubr.bf16.mxu0 0
        %796 = vmatmul.mubr.bf16.gmra.mxu0 %v635
        %v797 = vpop.f32.mrf.mxu0
        %v798 = vadd.f32 %v657, %v797
        %v799 = vpop.f32.mrf.mxu0
        %v800 = vpop.f32.mrf.mxu0
        %v801 = vadd.f32 %v657, %v800
        %v802 = vpop.f32.mrf.mxu0
        %803 = vdwg.mxu0
        %v804 = vmax.f32 %v742, 0.0
        %v805 = vmax.f32 %v745, 0.0
        %v806 = vmax.f32 %v750, 0.0
        %v807 = vmax.f32 %v753, 0.0
        %v808 = vmax.f32 %v758, 0.0
        %v809 = vmax.f32 %v761, 0.0
        %v810 = vmax.f32 %v766, 0.0
        %v811 = vmax.f32 %v769, 0.0
        %v812 = vmax.f32 %v774, 0.0
        %v813 = vmax.f32 %v777, 0.0
        %v814 = vmax.f32 %v782, 0.0
        %v815 = vmax.f32 %v785, 0.0
        %v816 = vmax.f32 %v790, 0.0
        %v817 = vmax.f32 %v793, 0.0
        %v818 = vmax.f32 %v798, 0.0
        %v819 = vmax.f32 %v801, 0.0
        %v820 = vld [vmem:[%s5] sm:$0x1]
        %v822 = vlaneseq
        %v823 = vshrl.u32 %v822, 7
        %v824 = vsub.s32 0, %v823
        %v825 = vrot.slane %v820, %v824
        %v827 = vmul.f32 %v804, %v825
        %v828 = vmul.f32 %v805, %v825
        %v829 = vmul.f32 %v806, %v825
        %v830 = vmul.f32 %v807, %v825
        %v831 = vmul.f32 %v808, %v825
        %v832 = vmul.f32 %v809, %v825
        %v833 = vmul.f32 %v810, %v825
        %v834 = vmul.f32 %v811, %v825
        %v835 = vmul.f32 %v812, %v825
        %v836 = vmul.f32 %v813, %v825
        %v837 = vmul.f32 %v814, %v825
        %v838 = vmul.f32 %v815, %v825
        %v839 = vmul.f32 %v816, %v825
        %v840 = vmul.f32 %v817, %v825
        %v841 = vmul.f32 %v818, %v825
        %v842 = vmul.f32 %v819, %v825
        %vm843 = vcmask 523264
        %v844 = vsel %vm843, %v827, 0.0
        %845 = vadd.xlane.f32.xlu0 %v844
        %v846 = vpop.xlane.xlu0 %845
        %v847 = vsel %vm843, %v828, 0.0
        %848 = vadd.xlane.f32.xlu0 %v847
        %v849 = vpop.xlane.xlu0 %848
        %v850 = vsel %vm843, %v829, 0.0
        %851 = vadd.xlane.f32.xlu0 %v850
        %v852 = vpop.xlane.xlu0 %851
        %v853 = vsel %vm843, %v830, 0.0
        %854 = vadd.xlane.f32.xlu0 %v853
        %v855 = vpop.xlane.xlu0 %854
        %v856 = vsel %vm843, %v831, 0.0
        %857 = vadd.xlane.f32.xlu0 %v856
        %v858 = vpop.xlane.xlu0 %857
        %v859 = vsel %vm843, %v832, 0.0
        %860 = vadd.xlane.f32.xlu0 %v859
        %v861 = vpop.xlane.xlu0 %860
        %v862 = vsel %vm843, %v833, 0.0
        %863 = vadd.xlane.f32.xlu0 %v862
        %v864 = vpop.xlane.xlu0 %863
        %v865 = vsel %vm843, %v834, 0.0
        %866 = vadd.xlane.f32.xlu0 %v865
        %v867 = vpop.xlane.xlu0 %866
        %v868 = vsel %vm843, %v835, 0.0
        %869 = vadd.xlane.f32.xlu0 %v868
        %v870 = vpop.xlane.xlu0 %869
        %v871 = vsel %vm843, %v836, 0.0
        %872 = vadd.xlane.f32.xlu0 %v871
        %v873 = vpop.xlane.xlu0 %872
        %v874 = vsel %vm843, %v837, 0.0
        %875 = vadd.xlane.f32.xlu0 %v874
        %v876 = vpop.xlane.xlu0 %875
        %v877 = vsel %vm843, %v838, 0.0
        %878 = vadd.xlane.f32.xlu0 %v877
        %v879 = vpop.xlane.xlu0 %878
        %v880 = vsel %vm843, %v839, 0.0
        %881 = vadd.xlane.f32.xlu0 %v880
        %v882 = vpop.xlane.xlu0 %881
        %v883 = vsel %vm843, %v840, 0.0
        %884 = vadd.xlane.f32.xlu0 %v883
        %v885 = vpop.xlane.xlu0 %884
        %v886 = vsel %vm843, %v841, 0.0
        %887 = vadd.xlane.f32.xlu0 %v886
        %v888 = vpop.xlane.xlu0 %887
        %v889 = vsel %vm843, %v842, 0.0
        %890 = vadd.xlane.f32.xlu0 %v889
        %v891 = vpop.xlane.xlu0 %890
        %v892 = vld [vmem:[#allocation2] sm:$0x1]
        %894 = vset.pattern.permute.xlu0 0
        %895 = vperm.xlu0 %894, %v892
        %v896 = vpop.permute.xlu0 %895
        %v898 = vlaneseq
        %v899 = vshrl.u32 %v898, 7
        %v900 = vsub.s32 0, %v899
        %v901 = vrot.slane %v896, %v900
        %v902 = vadd.f32 %v846, %v901
        %v903 = vadd.f32 %v849, %v901
        %v904 = vadd.f32 %v852, %v901
        %v905 = vadd.f32 %v855, %v901
        %v906 = vadd.f32 %v858, %v901
        %v907 = vadd.f32 %v861, %v901
        %v908 = vadd.f32 %v864, %v901
        %v909 = vadd.f32 %v867, %v901
        %v910 = vadd.f32 %v870, %v901
        %v911 = vadd.f32 %v873, %v901
        %v912 = vadd.f32 %v876, %v901
        %v913 = vadd.f32 %v879, %v901
        %v914 = vadd.f32 %v882, %v901
        %v915 = vadd.f32 %v885, %v901
        %v916 = vadd.f32 %v888, %v901
        %v917 = vadd.f32 %v891, %v901
        %v918 = vsub.f32 0.0, %v902
        %v919 = vsub.f32 0.0, %v903
        %v920 = vsub.f32 0.0, %v904
        %v921 = vsub.f32 0.0, %v905
        %v922 = vsub.f32 0.0, %v906
        %v923 = vsub.f32 0.0, %v907
        %v924 = vsub.f32 0.0, %v908
        %v925 = vsub.f32 0.0, %v909
        %v926 = vsub.f32 0.0, %v910
        %v927 = vsub.f32 0.0, %v911
        %v928 = vsub.f32 0.0, %v912
        %v929 = vsub.f32 0.0, %v913
        %v930 = vsub.f32 0.0, %v914
        %v931 = vsub.f32 0.0, %v915
        %v932 = vsub.f32 0.0, %v916
        %v933 = vsub.f32 0.0, %v917
        %v934 = vmul.f32 %v918, 1.442695
        %v935 = vpow.pop %v934
        %v936 = vmul.f32 %v919, 1.442695
        %v937 = vpow.pop %v936
        %v938 = vmul.f32 %v920, 1.442695
        %v939 = vpow.pop %v938
        %v940 = vmul.f32 %v921, 1.442695
        %v941 = vpow.pop %v940
        %v942 = vmul.f32 %v922, 1.442695
        %v943 = vpow.pop %v942
        %v944 = vmul.f32 %v923, 1.442695
        %v945 = vpow.pop %v944
        %v946 = vmul.f32 %v924, 1.442695
        %v947 = vpow.pop %v946
        %v948 = vmul.f32 %v925, 1.442695
        %v949 = vpow.pop %v948
        %v950 = vmul.f32 %v926, 1.442695
        %v951 = vpow.pop %v950
        %v952 = vmul.f32 %v927, 1.442695
        %v953 = vpow.pop %v952
        %v954 = vmul.f32 %v928, 1.442695
        %v955 = vpow.pop %v954
        %v956 = vmul.f32 %v929, 1.442695
        %v957 = vpow.pop %v956
        %v958 = vmul.f32 %v930, 1.442695
        %v959 = vpow.pop %v958
        %v960 = vmul.f32 %v931, 1.442695
        %v961 = vpow.pop %v960
        %v962 = vmul.f32 %v932, 1.442695
        %v963 = vpow.pop %v962
        %v964 = vmul.f32 %v933, 1.442695
        %v965 = vpow.pop %v964
        %v966 = vadd.f32 %v935, 1.0
        %v967 = vadd.f32 %v937, 1.0
        %v968 = vadd.f32 %v939, 1.0
        %v969 = vadd.f32 %v941, 1.0
        %v970 = vadd.f32 %v943, 1.0
        %v971 = vadd.f32 %v945, 1.0
        %v972 = vadd.f32 %v947, 1.0
        %v973 = vadd.f32 %v949, 1.0
        %v974 = vadd.f32 %v951, 1.0
        %v975 = vadd.f32 %v953, 1.0
        %v976 = vadd.f32 %v955, 1.0
        %v977 = vadd.f32 %v957, 1.0
        %v978 = vadd.f32 %v959, 1.0
        %v979 = vadd.f32 %v961, 1.0
        %v980 = vadd.f32 %v963, 1.0
        %v981 = vadd.f32 %v965, 1.0
        %v982 = vrcp.pop %v966
        %v983 = vrcp.pop %v967
        %v984 = vrcp.pop %v968
        %v985 = vrcp.pop %v969
        %v986 = vrcp.pop %v970
        %v987 = vrcp.pop %v971
        %v988 = vrcp.pop %v972
        %v989 = vrcp.pop %v973
        %v990 = vrcp.pop %v974
        %v991 = vrcp.pop %v975
        %v992 = vrcp.pop %v976
        %v993 = vrcp.pop %v977
        %v994 = vrcp.pop %v978
        %v995 = vrcp.pop %v979
        %v996 = vrcp.pop %v980
        %v997 = vrcp.pop %v981
        %v1014 = vlaneseq
        %v1015 = vand.u32 %v1014, 127
        %v1016 = vlaneseq
        %v1017 = vshrl.u32 %v1016, 7
        %v1018 = vsub.s32 %v1015, %v1017
        %v1019 = vrot.slane %v982, %v1018
        %v1020 = vadd.s32 %v1015, 4294967288
        %v1021 = vlaneseq
        %v1022 = vshrl.u32 %v1021, 7
        %v1023 = vsub.s32 %v1020, %v1022
        %v1024 = vrot.slane %v983, %v1023
        %vm1025 = vcmask 130112
        %v1026 = vsel %vm1025, %v1024, %v1019
        %v1027 = vadd.s32 %v1015, 4294967280
        %v1028 = vlaneseq
        %v1029 = vshrl.u32 %v1028, 7
        %v1030 = vsub.s32 %v1027, %v1029
        %v1031 = vrot.slane %v984, %v1030
        %vm1032 = vcmask 195712
        %v1033 = vsel %vm1032, %v1031, %v1026
        %v1034 = vadd.s32 %v1015, 4294967272
        %v1035 = vlaneseq
        %v1036 = vshrl.u32 %v1035, 7
        %v1037 = vsub.s32 %v1034, %v1036
        %v1038 = vrot.slane %v985, %v1037
        %vm1039 = vcmask 261312
        %v1040 = vsel %vm1039, %v1038, %v1033
        %v1041 = vadd.s32 %v1015, 4294967264
        %v1042 = vlaneseq
        %v1043 = vshrl.u32 %v1042, 7
        %v1044 = vsub.s32 %v1041, %v1043
        %v1045 = vrot.slane %v986, %v1044
        %vm1046 = vcmask 326912
        %v1047 = vsel %vm1046, %v1045, %v1040
        %v1048 = vadd.s32 %v1015, 4294967256
        %v1049 = vlaneseq
        %v1050 = vshrl.u32 %v1049, 7
        %v1051 = vsub.s32 %v1048, %v1050
        %v1052 = vrot.slane %v987, %v1051
        %vm1053 = vcmask 392512
        %v1054 = vsel %vm1053, %v1052, %v1047
        %v1055 = vadd.s32 %v1015, 4294967248
        %v1056 = vlaneseq
        %v1057 = vshrl.u32 %v1056, 7
        %v1058 = vsub.s32 %v1055, %v1057
        %v1059 = vrot.slane %v988, %v1058
        %vm1060 = vcmask 458112
        %v1061 = vsel %vm1060, %v1059, %v1054
        %v1062 = vadd.s32 %v1015, 4294967240
        %v1063 = vlaneseq
        %v1064 = vshrl.u32 %v1063, 7
        %v1065 = vsub.s32 %v1062, %v1064
        %v1066 = vrot.slane %v989, %v1065
        %vm1067 = vcmask 523712
        %v1068 = vsel %vm1067, %v1066, %v1061
        %v1069 = vadd.s32 %v1015, 4294967232
        %v1070 = vlaneseq
        %v1071 = vshrl.u32 %v1070, 7
        %v1072 = vsub.s32 %v1069, %v1071
        %v1073 = vrot.slane %v990, %v1072
        %vm1074 = vcmask 589312
        %v1075 = vsel %vm1074, %v1073, %v1068
        %v1076 = vadd.s32 %v1015, 4294967224
        %v1077 = vlaneseq
        %v1078 = vshrl.u32 %v1077, 7
        %v1079 = vsub.s32 %v1076, %v1078
        %v1080 = vrot.slane %v991, %v1079
        %vm1081 = vcmask 654912
        %v1082 = vsel %vm1081, %v1080, %v1075
        %v1083 = vadd.s32 %v1015, 4294967216
        %v1084 = vlaneseq
        %v1085 = vshrl.u32 %v1084, 7
        %v1086 = vsub.s32 %v1083, %v1085
        %v1087 = vrot.slane %v992, %v1086
        %vm1088 = vcmask 720512
        %v1089 = vsel %vm1088, %v1087, %v1082
        %v1090 = vadd.s32 %v1015, 4294967208
        %v1091 = vlaneseq
        %v1092 = vshrl.u32 %v1091, 7
        %v1093 = vsub.s32 %v1090, %v1092
        %v1094 = vrot.slane %v993, %v1093
        %vm1095 = vcmask 786112
        %v1096 = vsel %vm1095, %v1094, %v1089
        %v1097 = vadd.s32 %v1015, 4294967200
        %v1098 = vlaneseq
        %v1099 = vshrl.u32 %v1098, 7
        %v1100 = vsub.s32 %v1097, %v1099
        %v1101 = vrot.slane %v994, %v1100
        %vm1102 = vcmask 851712
        %v1103 = vsel %vm1102, %v1101, %v1096
        %v1104 = vadd.s32 %v1015, 4294967192
        %v1105 = vlaneseq
        %v1106 = vshrl.u32 %v1105, 7
        %v1107 = vsub.s32 %v1104, %v1106
        %v1108 = vrot.slane %v995, %v1107
        %vm1109 = vcmask 917312
        %v1110 = vsel %vm1109, %v1108, %v1103
        %v1111 = vadd.s32 %v1015, 4294967184
        %v1112 = vlaneseq
        %v1113 = vshrl.u32 %v1112, 7
        %v1114 = vsub.s32 %v1111, %v1113
        %v1115 = vrot.slane %v996, %v1114
        %vm1116 = vcmask 982912
        %v1117 = vsel %vm1116, %v1115, %v1110
        %v1118 = vadd.s32 %v1015, 4294967176
        %v1119 = vlaneseq
        %v1120 = vshrl.u32 %v1119, 7
        %v1121 = vsub.s32 %v1118, %v1120
        %v1122 = vrot.slane %v997, %v1121
        %vm1123 = vcmask 1048512
        %v1124 = vsel %vm1123, %v1122, %v1117
        %1126 = vst [vmem:[%s275] sm:$0x1] %v1124
        %s1127 = sand.u32 %s183, 1
        %s1128 = scalar_lea.sflag [#allocation4], %s1127
        %s1129 = sand.u32 %s183, 1
        %s1130 = scalar_lea.vmem [#allocation3], %s1129
        // Predicated region
        $region49: #{text_classifier_forward.1} parent=47 // pred_check
          %p1131 = pneg %p193
        $region50: #{text_classifier_forward.1} parent=47 // pred_check_branch
          %1133 = sbr.rel (%p1131) target = $region52
        $region51: #{text_classifier_forward.1} parent=47 // pred_region
          %s1135 = ssub.s32 16, 16
          %1136 = vsyncadd %s1128, %s1135
          %s1137 = smul.addr %s23, 16
          %s1138 = scalar_lea.hbm %s7, %s1137
          %s1140 = sshll.u32 %s1130, 4
          %s1141 = int_to_ptr.vmem [resolvable:$true] %s1140
          %1143 = dma.vmem_to_hbm [thread:$0]  %s1141, 16, %s1138, %s1128
        $region52: #{text_classifier_forward.1} parent=47 // pred_fallthru
          _
      $region48: #{text_classifier_forward.1} parent=5 // pred_fallthru
        _
      %p1144 = scmp.le.s32.totalorder 2, %s18
      // Predicated region
      $region53: #{text_classifier_forward.1} parent=5 // pred_check
        %p1145 = pneg %p1144
      $region54: #{text_classifier_forward.1} parent=5 // pred_check_branch
        %1147 = sbr.rel (%p1145) target = $region56
      $region55: #{text_classifier_forward.1} parent=5 // pred_region
        %s1148 = ssub.s32 %s18, 2
        // Predicated region
        $region57: #{text_classifier_forward.1} parent=55 // pred_check
          %p1149 = pneg %p199
        $region58: #{text_classifier_forward.1} parent=55 // pred_check_branch
          %1151 = sbr.rel (%p1149) target = $region60
        $region59: #{text_classifier_forward.1} parent=55 // pred_region
          %s1152 = sand.u32 %s184, 1
          %s1153 = scalar_lea.sflag [#allocation4], %s1152
          %s1154 = sand.u32 %s184, 1
          %s1155 = scalar_lea.vmem [#allocation3], %s1154
          %1156 = dma.done %s1153, 16
        $region60: #{text_classifier_forward.1} parent=55 // pred_fallthru
          _
      $region56: #{text_classifier_forward.1} parent=5 // pred_fallthru
        _
    $region6: #{text_classifier_forward.1} parent=1 // loop_footer
      %s22 = sadd.s32 1, %s18
    $region7: #{text_classifier_forward.1} parent=1 // loop_footer_branch
      %17 = sbr.rel target = $region3
    $region8: #{text_classifier_forward.1} parent=1 // loop_exit
      _
    %1157 = vsyncpa [#allocation4], 1
    %s1158 = scalar_lea.sflag [#allocation4], 1
    %1159 = vsyncpa %s1158, 1

</llo_original>
